<compile_context>
chip_gen: v5e
topology: v5e:2x2
jax: 0.10.0
libtpu: 0.0.40
codegen_flags: <defaults>
</compile_context>

<pallas_src>
import numpy as np
import jax
import jax.numpy as jnp
from jax import lax
from jax.experimental import pallas as pl
from jax.experimental.pallas import tpu as pltpu


def _round_up(x, m):
    return (x + m - 1) // m * m


# ---------------------------------------------------------------------------
# Kernel: multi-hot MXU gather(+grouped-conv)  ->  ReLU  ->  proj matmul + bias
# ---------------------------------------------------------------------------
def decoder_kernel(y_ref, tbl_ref, projw_ref, projb_ref, out_ref):
    # y_ref:     (tile_n, C)   int32 token ids (VMEM block)
    # tbl_ref:   (C*V_pad, D)  conv-folded embedding tables, context-stacked;
    #                          padded vocab rows are zero.
    # projw_ref: (D, J)        decoder_proj weight, transposed
    # projb_ref: (1, J)        decoder_proj bias (f32)
    # out_ref:   (tile_n, J)   f32
    tile_n, c = y_ref.shape
    cv, _ = tbl_ref.shape
    v_pad = cv // c

    ids = y_ref[...]                                             # (tile_n, C) int32
    col = lax.broadcasted_iota(jnp.int32, (tile_n, cv), 1)
    # Multi-hot indicator: row n has a 1 at column k*V_pad + y[n, k] for every
    # context position k.  Out-of-range ids match nothing -> zero contribution,
    # so the kernel can never read out of bounds.
    hit = col == ids[:, 0:1]
    for k in range(1, c):                 # context_size is tiny -> static unroll
        hit = jnp.logical_or(hit, col == (ids[:, k:k + 1] + k * v_pad))
    onehot = hit.astype(tbl_ref.dtype)                           # (tile_n, C*V_pad)

    # Embedding gather + grouped Conv1d over the whole context == ONE dense
    # MXU pass against the pre-fused tables (K = C*V_pad), f32 accumulation.
    h = jnp.dot(onehot, tbl_ref[...], preferred_element_type=jnp.float32)
    h = jnp.maximum(h, 0.0)                                      # ReLU in f32 (VPU)

    # decoder_proj: (tile_n, D) @ (D, J) + bias, f32 accumulate, lane-dense out.
    out = jnp.dot(h.astype(projw_ref.dtype), projw_ref[...],
                  preferred_element_type=jnp.float32) + projb_ref[...]
    out_ref[...] = out.astype(out_ref.dtype)


# ---------------------------------------------------------------------------
# One-time parameter preprocessing (hoisted out of the per-call forward)
# ---------------------------------------------------------------------------
def prepare_decoder_params(emb_table, conv_w, proj_w, proj_b,
                           compute_dtype=jnp.float32):
    """Fold the grouped Conv1d into the embedding table and pack MXU-friendly
    parameters once.

    conv_w is the PyTorch Conv1d weight of shape (D, D//groups, C) = (D, 4, C).
    Returns:
      fused_tbl (C*V_pad, D) compute_dtype : T[k*V_pad + v, o] = conv_k(emb[v])[o]
      proj_w_t  (D, J)       compute_dtype : decoder_proj weight, transposed
      proj_b    (1, J)       f32
    """
    V, D = emb_table.shape
    d_out, ipg, C = conv_w.shape
    assert d_out == D and D % ipg == 0
    G = D // ipg
    J = proj_w.shape[0]

    # T[k, v, o] = sum_j conv_w[o, j, k] * emb_table[v, (o//ipg)*ipg + j]
    emb_g = emb_table.astype(jnp.float32).reshape(V, G, ipg)      # [v, g, j]
    cw = conv_w.astype(jnp.float32).reshape(G, ipg, ipg, C)       # [g, o, j, k]
    T = jnp.einsum("vgj,gojk->kvgo", emb_g, cw,
                   precision=lax.Precision.HIGHEST)               # (C, V, G, ipg)
    T = T.reshape(C, V, D)

    # Pad vocab to a lane multiple and stack the C tables along rows so the
    # kernel does a single (tile_n, C*V_pad) @ (C*V_pad, D) matmul.
    V_pad = _round_up(max(V, 8), 128)
    T = jnp.pad(T, ((0, 0), (0, V_pad - V), (0, 0)))
    fused_tbl = T.reshape(C * V_pad, D).astype(compute_dtype)

    return {
        "fused_tbl": fused_tbl,                                   # (C*V_pad, D)
        "proj_w_t": proj_w.T.astype(compute_dtype),               # (D, J)
        "proj_b": proj_b.reshape(1, J).astype(jnp.float32),       # (1, J)
    }


# ---------------------------------------------------------------------------
# Forward (hot path)
# ---------------------------------------------------------------------------
_N_BUCKETS = (8, 16, 32, 64, 128, 256, 512)


def _bucket_batch(n):
    """Pad the batch to a small set of fixed buckets -> bounded recompiles."""
    for b in _N_BUCKETS:
        if n <= b:
            return b
    return _round_up(n, _N_BUCKETS[-1])


def _choose_tile_n(n_pad):
    # <=128 rows: a single step.  Larger batches: >=2 'parallel' grid steps
    # (so v7x can split across its 2 TensorCores), tile capped at 256 rows
    # (fills the v6e/v7x MXU M-depth; per-step VMEM stays << 1 MiB).
    if n_pad <= 128:
        return n_pad
    tile = min(256, n_pad // 2)
    assert n_pad % tile == 0
    return tile


@jax.jit
def _forward_padded(y_pad, fused_tbl, proj_w_t, proj_b):
    n_pad, C = y_pad.shape
    CV, D = fused_tbl.shape
    J = proj_w_t.shape[1]
    tile_n = _choose_tile_n(n_pad)
    grid = (n_pad // tile_n,)

    itemsize = lambda a: a.size * a.dtype.itemsize
    cost = pl.CostEstimate(
        flops=2 * n_pad * CV * D + 2 * n_pad * D * J + 2 * n_pad * J,
        transcendentals=0,
        bytes_accessed=(itemsize(y_pad) + itemsize(fused_tbl)
                        + itemsize(proj_w_t) + itemsize(proj_b)
                        + n_pad * J * 4),
    )

    return pl.pallas_call(
        decoder_kernel,
        out_shape=jax.ShapeDtypeStruct((n_pad, J), jnp.float32),
        grid_spec=pltpu.PrefetchScalarGridSpec(
            num_scalar_prefetch=0,
            grid=grid,
            in_specs=[
                pl.BlockSpec((tile_n, C), lambda i: (i, 0)),   # token ids
                # Constant index_map -> weights stay VMEM-resident across steps.
                # (For a huge vocab: keep the table in HBM via memory_space=pl.ANY
                #  and DMA rows; on v7x consider pipeline_mode=pl.Buffered(1).)
                pl.BlockSpec((CV, D), lambda i: (0, 0)),       # fused emb⊗conv tables
                pl.BlockSpec((D, J), lambda i: (0, 0)),        # proj weight^T
                pl.BlockSpec((1, J), lambda i: (0, 0)),        # proj bias
            ],
            out_specs=pl.BlockSpec((tile_n, J), lambda i: (i, 0)),
        ),
        compiler_params=pltpu.CompilerParams(
            dimension_semantics=("parallel",),
        ),
        cost_estimate=cost,
    )(y_pad, fused_tbl, proj_w_t, proj_b)


def onnx_decoder_forward(y_tokens, params):
    """y_tokens: (N, C) int tokens -> (N, joiner_dim) float32."""
    N, _ = y_tokens.shape
    n_pad = _bucket_batch(N)
    y_pad = jnp.pad(y_tokens.astype(jnp.int32), ((0, n_pad - N), (0, 0)))
    out = _forward_padded(y_pad, params["fused_tbl"], params["proj_w_t"],
                          params["proj_b"])
    return out[:N]


# ---------------------------------------------------------------------------
# Pure-JAX reference mirroring the PyTorch module exactly (accurate f32)
# ---------------------------------------------------------------------------
def reference_forward(y_tokens, emb_table, conv_w, proj_w, proj_b):
    D = emb_table.shape[1]
    G = D // conv_w.shape[1]
    emb = jnp.take(emb_table, y_tokens, axis=0)          # (N, C, D)
    x = jnp.transpose(emb, (0, 2, 1))                    # (N, D, C) == PyTorch NCW
    conv = lax.conv_general_dilated(
        x, conv_w,
        window_strides=(1,), padding="VALID",
        dimension_numbers=("NCH", "OIH", "NCH"),
        feature_group_count=G,
        precision=lax.Precision.HIGHEST,
    )                                                    # (N, D, 1)
    h = jnp.maximum(conv[:, :, 0], 0.0)                  # squeeze + ReLU
    return jnp.matmul(h, proj_w.T, precision=lax.Precision.HIGHEST) + proj_b


if __name__ == "__main__":
    # Small, module-consistent shapes
    N = 8               # batch (streams / beams)
    context_size = 2    # zipformer decoder context
    vocab_size = 100
    decoder_dim = 128   # Conv1d groups = decoder_dim // 4
    joiner_dim = 128

    key = jax.random.PRNGKey(0)
    k_emb, k_conv, k_pw, k_pb, k_y = jax.random.split(key, 5)

    emb_table = jax.random.normal(k_emb, (vocab_size, decoder_dim), jnp.float32) * 0.1
    conv_w = jax.random.normal(
        k_conv, (decoder_dim, 4, context_size), jnp.float32) * 0.1   # (out, in/groups, k)
    proj_w = jax.random.normal(k_pw, (joiner_dim, decoder_dim), jnp.float32) * 0.1
    proj_b = jax.random.normal(k_pb, (joiner_dim,), jnp.float32) * 0.1
    y = jax.random.randint(k_y, (N, context_size), 0, vocab_size, jnp.int32)

    ref = jax.block_until_ready(
        reference_forward(y, emb_table, conv_w, proj_w, proj_b))

    # f32 parameter path.
    p32 = prepare_decoder_params(emb_table, conv_w, proj_w, proj_b,
                                 compute_dtype=jnp.float32)
    out32 = jax.block_until_ready(onnx_decoder_forward(y, p32))
    assert out32.shape == (N, joiner_dim)
    assert np.allclose(np.asarray(out32), np.asarray(ref), rtol=1e-3, atol=1e-3), (
        "f32 kernel mismatch vs reference")

    # bf16 parameter path (MXU-native storage, f32 accumulation): looser tol.
    pbf = prepare_decoder_params(emb_table, conv_w, proj_w, proj_b,
                                 compute_dtype=jnp.bfloat16)
    outbf = jax.block_until_ready(onnx_decoder_forward(y, pbf))
    assert outbf.shape == (N, joiner_dim)
    assert np.allclose(np.asarray(outbf), np.asarray(ref), rtol=5e-2, atol=5e-2), (
        "bf16 kernel mismatch vs reference")

    print("KERNEL_OK")
</pallas_src>

<mosaic_0001>
module attributes {stable_mosaic.version = 11 : i64} {
  func.func @decoder_kernel(%arg0: i32, %arg1: memref<8x2xi32, #tpu.memory_space<vmem>>, %arg2: memref<256x128xf32, #tpu.memory_space<vmem>>, %arg3: memref<128x128xf32, #tpu.memory_space<vmem>>, %arg4: memref<1x128xf32, #tpu.memory_space<vmem>>, %arg5: memref<8x128xf32, #tpu.memory_space<vmem>>) attributes {dimension_semantics = [#tpu.dimension_semantics<parallel>], iteration_bounds = array<i64: 1>, scalar_prefetch = 0 : i64, scratch_operands = 0 : i64, tpu.core_type = #tpu.core_type<tc>, window_params = [{transform_indices = @transform_0, window_bounds = array<i64: 8, 2>}, {pipeline_mode = #tpu.pipeline_mode<synchronous>, transform_indices = @transform_1, window_bounds = array<i64: 256, 128>}, {pipeline_mode = #tpu.pipeline_mode<synchronous>, transform_indices = @transform_2, window_bounds = array<i64: 128, 128>}, {pipeline_mode = #tpu.pipeline_mode<synchronous>, transform_indices = @transform_3, window_bounds = array<i64: 1, 128>}, {transform_indices = @transform_4, window_bounds = array<i64: 8, 128>}]} {
    %c0 = arith.constant 0 : index
    %c0_0 = arith.constant 0 : index
    %0 = vector.load %arg1[%c0, %c0_0] : memref<8x2xi32, #tpu.memory_space<vmem>>, vector<8x2xi32>
    %1 = tpu.iota {dimensions = array<i32: 1>} : vector<8x256xi32>
    %2 = vector.extract_strided_slice %0 {offsets = [0, 0], sizes = [8, 1], strides = [1, 1]} : vector<8x2xi32> to vector<8x1xi32>
    %3 = vector.broadcast %2 : vector<8x1xi32> to vector<8x256xi32>
    %4 = arith.cmpi eq, %1, %3 : vector<8x256xi32>
    %5 = vector.extract_strided_slice %0 {offsets = [0, 1], sizes = [8, 1], strides = [1, 1]} : vector<8x2xi32> to vector<8x1xi32>
    %c128_i32 = arith.constant 128 : i32
    %6 = vector.broadcast %c128_i32 : i32 to vector<8x1xi32>
    %7 = arith.addi %5, %6 : vector<8x1xi32>
    %8 = vector.broadcast %7 : vector<8x1xi32> to vector<8x256xi32>
    %9 = arith.cmpi eq, %1, %8 : vector<8x256xi32>
    %10 = arith.ori %4, %9 : vector<8x256xi1>
    %11 = arith.extui %10 : vector<8x256xi1> to vector<8x256xi32>
    %12 = arith.sitofp %11 : vector<8x256xi32> to vector<8x256xf32>
    %c0_1 = arith.constant 0 : index
    %c0_2 = arith.constant 0 : index
    %13 = vector.load %arg2[%c0_1, %c0_2] : memref<256x128xf32, #tpu.memory_space<vmem>>, vector<256x128xf32>
    %cst = arith.constant dense<0.000000e+00> : vector<8x128xf32>
    %14 = tpu.matmul %12, %13, %cst {dimension_numbers = #tpu.dot_dimension_numbers<[1], [0], [0], [1], [0, 0, 1, 1], [], []>} : vector<8x256xf32>, vector<256x128xf32>, vector<8x128xf32> -> vector<8x128xf32>
    %cst_3 = arith.constant 0.000000e+00 : f32
    %15 = vector.broadcast %cst_3 : f32 to vector<8x128xf32>
    %16 = arith.maximumf %14, %15 : vector<8x128xf32>
    %c0_4 = arith.constant 0 : index
    %c0_5 = arith.constant 0 : index
    %17 = vector.load %arg3[%c0_4, %c0_5] : memref<128x128xf32, #tpu.memory_space<vmem>>, vector<128x128xf32>
    %cst_6 = arith.constant dense<0.000000e+00> : vector<8x128xf32>
    %18 = tpu.matmul %16, %17, %cst_6 {dimension_numbers = #tpu.dot_dimension_numbers<[1], [0], [0], [1], [0, 0, 1, 1], [], []>} : vector<8x128xf32>, vector<128x128xf32>, vector<8x128xf32> -> vector<8x128xf32>
    %c0_7 = arith.constant 0 : index
    %c0_8 = arith.constant 0 : index
    %19 = vector.load %arg4[%c0_7, %c0_8] : memref<1x128xf32, #tpu.memory_space<vmem>>, vector<1x128xf32>
    %20 = vector.broadcast %19 : vector<1x128xf32> to vector<8x128xf32>
    %21 = arith.addf %18, %20 : vector<8x128xf32>
    %c0_9 = arith.constant 0 : index
    %c0_10 = arith.constant 0 : index
    %22 = vector.load %arg5[%c0_9, %c0_10] : memref<8x128xf32, #tpu.memory_space<vmem>>, vector<8x128xf32>
    tpu.vector_store %arg5[%c0_9, %c0_10], %21 {strides = array<i32>} : memref<8x128xf32, #tpu.memory_space<vmem>>, vector<8x128xf32>,
    return
  }
  func.func @transform_0(%arg0: i32) -> (i32, i32) {
    %c0_i32 = arith.constant 0 : i32
    %c0_i32_0 = arith.constant 0 : i32
    return %arg0, %c0_i32 : i32, i32
  }
  func.func @transform_1(%arg0: i32) -> (i32, i32) {
    %c0_i32 = arith.constant 0 : i32
    %c0_i32_0 = arith.constant 0 : i32
    %c0_i32_1 = arith.constant 0 : i32
    return %c0_i32, %c0_i32_0 : i32, i32
  }
  func.func @transform_2(%arg0: i32) -> (i32, i32) {
    %c0_i32 = arith.constant 0 : i32
    %c0_i32_0 = arith.constant 0 : i32
    %c0_i32_1 = arith.constant 0 : i32
    return %c0_i32, %c0_i32_0 : i32, i32
  }
  func.func @transform_3(%arg0: i32) -> (i32, i32) {
    %c0_i32 = arith.constant 0 : i32
    %c0_i32_0 = arith.constant 0 : i32
    %c0_i32_1 = arith.constant 0 : i32
    return %c0_i32, %c0_i32_0 : i32, i32
  }
  func.func @transform_4(%arg0: i32) -> (i32, i32) {
    %c0_i32 = arith.constant 0 : i32
    %c0_i32_0 = arith.constant 0 : i32
    return %arg0, %c0_i32 : i32, i32
  }
}

</mosaic_0001>

<llo_original>
// kernel: _forward_padded.1
$region0: #{_forward_padded.1}
  #allocation0 [shape = 'u32[]', space=smem, size = 0x4, offset = 0x4, fixed_abs, tag = 'smem constant byte address 0x4 - core index']
  #allocation1 [shape = 'u32[72,128]{1,0:T(1,128)}', space=vmem, size = 0x9000, scoped, tag = 'internal scratch']
  %s0 = inlined_call_operand.vmem [shape: s32[8,2], index: 0, kind: input, shape index: {}]
  %s1 = inlined_call_operand.hbm [shape: f32[256,128], index: 1, kind: input, shape index: {}]
  %s2 = inlined_call_operand.hbm [shape: f32[128,128], index: 2, kind: input, shape index: {}]
  %s3 = inlined_call_operand.vmem [shape: f32[1,128], index: 3, kind: input, shape index: {}]
  %s4 = inlined_call_operand.hbm [shape: f32[8,128], index: 4, kind: output, shape index: {}]
  %s5 = sld [smem:[#allocation0]]
  $region34: #{_forward_padded.1} parent=0
    _
  %s7 = ssub.s32 1, %s5
  %s8 = scalar_select 0, %s7, %s5
  $region1: #{_forward_padded.1} parent=0
    #allocation2 [shape = 'u8[131072]{0}', space=vmem, size = 0x20000, scoped, tag = 'input window, operand 1, single buffered']
    #allocation3 [shape = 's32[1]{0}', space=sflag, size = 0x4, scoped, tag = 'scoped memory for _forward_padded.1']
    #allocation4 [shape = 's32[1]{0}', space=sflag, size = 0x4, scoped, tag = 'scoped memory for _forward_padded.1']
    #allocation5 [shape = 'u8[65536]{0}', space=vmem, size = 0x10000, scoped, tag = 'input window, operand 2, single buffered']
    #allocation6 [shape = 's32[1]{0}', space=sflag, size = 0x4, scoped, tag = 'scoped memory for _forward_padded.1']
    #allocation7 [shape = 'u8[4096]{0}', space=vmem, size = 0x1000, scoped, tag = 'output window, operand 0, single buffered']
    %9 = vsyncpa [#allocation3], 0
    %10 = vsyncpa [#allocation6], 0
    %11 = vsyncpa [#allocation4], 0
    // Predicated region
    $region2: #{_forward_padded.1} parent=1 // pred_check
      _
    $region3: #{_forward_padded.1} parent=1 // pred_check_branch
      %13 = sbr.rel (0) target = $region5
    $region4: #{_forward_padded.1} parent=1 // pred_region
      _
    $region5: #{_forward_padded.1} parent=1 // pred_fallthru
      _
    // Predicated region
    $region6: #{_forward_padded.1} parent=1 // pred_check
      _
    $region7: #{_forward_padded.1} parent=1 // pred_check_branch
      %15 = sbr.rel (0) target = $region9
    $region8: #{_forward_padded.1} parent=1 // pred_region
      %17 = vsyncadd [#allocation3], 0
      %s18 = sshll.u32 %s1, 4
      %s19 = int_to_ptr.hbm [resolvable:$true] %s18
      %s20 = sshll.u32 [#allocation2], 4
      %s21 = int_to_ptr.vmem [resolvable:$true] %s20
      %26 = dma.hbm_to_vmem [thread:$0]  %s19, 4096, %s21, [#allocation3], 128, 128, 8
    $region9: #{_forward_padded.1} parent=1 // pred_fallthru
      _
    // Predicated region
    $region10: #{_forward_padded.1} parent=1 // pred_check
      _
    $region11: #{_forward_padded.1} parent=1 // pred_check_branch
      %28 = sbr.rel (0) target = $region13
    $region12: #{_forward_padded.1} parent=1 // pred_region
      %30 = vsyncadd [#allocation6], 0
      %s31 = sshll.u32 %s2, 4
      %s32 = int_to_ptr.hbm [resolvable:$true] %s31
      %s33 = sshll.u32 [#allocation5], 4
      %s34 = int_to_ptr.vmem [resolvable:$true] %s33
      %39 = dma.hbm_to_vmem [thread:$0]  %s32, 2048, %s34, [#allocation6], 128, 128, 8
    $region13: #{_forward_padded.1} parent=1 // pred_fallthru
      _
    // Predicated region
    $region14: #{_forward_padded.1} parent=1 // pred_check
      _
    $region15: #{_forward_padded.1} parent=1 // pred_check_branch
      %41 = sbr.rel (0) target = $region17
    $region16: #{_forward_padded.1} parent=1 // pred_region
      _
    $region17: #{_forward_padded.1} parent=1 // pred_fallthru
      _
    // Predicated region
    $region18: #{_forward_padded.1} parent=1 // pred_check
      _
    $region19: #{_forward_padded.1} parent=1 // pred_check_branch
      %43 = sbr.rel (0) target = $region21
    $region20: #{_forward_padded.1} parent=1 // pred_region
      %45 = dma.done [#allocation3], 4096
    $region21: #{_forward_padded.1} parent=1 // pred_fallthru
      _
    // Predicated region
    $region22: #{_forward_padded.1} parent=1 // pred_check
      _
    $region23: #{_forward_padded.1} parent=1 // pred_check_branch
      %47 = sbr.rel (0) target = $region25
    $region24: #{_forward_padded.1} parent=1 // pred_region
      %49 = dma.done [#allocation6], 2048
    $region25: #{_forward_padded.1} parent=1 // pred_fallthru
      _
    %v50 = vld [vmem:[%s0] sm:$0xff]
    %v51 = vlaneseq
    %v52 = vand.u32 %v51, 127
    %v53 = vadd.s32 %v52, 128
    %54 = vset.pattern.permute.xlu0 0
    %55 = vperm.xlu0 %54, %v50
    %v56 = vpop.permute.xlu0 %55
    %vm57 = vcmp.eq.s32.totalorder %v52, %v56
    %vm58 = vcmp.eq.s32.totalorder %v53, %v56
    %v59 = vadd.s32 %v50, 128
    %60 = vset.pattern.permute.xlu0 1
    %61 = vperm.xlu0 %60, %v59
    %v62 = vpop.permute.xlu0 %61
    %vm63 = vcmp.eq.s32.totalorder %v52, %v62
    %vm64 = vcmp.eq.s32.totalorder %v53, %v62
    %vm65 = vmor %vm57, %vm63
    %vm66 = vmor %vm58, %vm64
    %v67 = vsel %vm65, 1, 0
    %v68 = vsel %vm66, 1, 0
    %v69 = vcvt.s32.f32 %v67
    %v70 = vcvt.s32.f32 %v68
    %v71 = vld [vmem:[#allocation2] sm:$0xff]
    %v72 = vld [vmem:[#allocation2 + $0x8] sm:$0xff]
    %v73 = vld [vmem:[#allocation2 + $0x10] sm:$0xff]
    %v74 = vld [vmem:[#allocation2 + $0x18] sm:$0xff]
    %v75 = vld [vmem:[#allocation2 + $0x20] sm:$0xff]
    %v76 = vld [vmem:[#allocation2 + $0x28] sm:$0xff]
    %v77 = vld [vmem:[#allocation2 + $0x30] sm:$0xff]
    %v78 = vld [vmem:[#allocation2 + $0x38] sm:$0xff]
    %v79 = vld [vmem:[#allocation2 + $0x40] sm:$0xff]
    %v80 = vld [vmem:[#allocation2 + $0x48] sm:$0xff]
    %v81 = vld [vmem:[#allocation2 + $0x50] sm:$0xff]
    %v82 = vld [vmem:[#allocation2 + $0x58] sm:$0xff]
    %v83 = vld [vmem:[#allocation2 + $0x60] sm:$0xff]
    %v84 = vld [vmem:[#allocation2 + $0x68] sm:$0xff]
    %v85 = vld [vmem:[#allocation2 + $0x70] sm:$0xff]
    %v86 = vld [vmem:[#allocation2 + $0x78] sm:$0xff]
    %v87 = vld [vmem:[#allocation2 + $0x80] sm:$0xff]
    %v88 = vld [vmem:[#allocation2 + $0x88] sm:$0xff]
    %v89 = vld [vmem:[#allocation2 + $0x90] sm:$0xff]
    %v90 = vld [vmem:[#allocation2 + $0x98] sm:$0xff]
    %v91 = vld [vmem:[#allocation2 + $0xa0] sm:$0xff]
    %v92 = vld [vmem:[#allocation2 + $0xa8] sm:$0xff]
    %v93 = vld [vmem:[#allocation2 + $0xb0] sm:$0xff]
    %v94 = vld [vmem:[#allocation2 + $0xb8] sm:$0xff]
    %v95 = vld [vmem:[#allocation2 + $0xc0] sm:$0xff]
    %v96 = vld [vmem:[#allocation2 + $0xc8] sm:$0xff]
    %v97 = vld [vmem:[#allocation2 + $0xd0] sm:$0xff]
    %v98 = vld [vmem:[#allocation2 + $0xd8] sm:$0xff]
    %v99 = vld [vmem:[#allocation2 + $0xe0] sm:$0xff]
    %v100 = vld [vmem:[#allocation2 + $0xe8] sm:$0xff]
    %v101 = vld [vmem:[#allocation2 + $0xf0] sm:$0xff]
    %v102 = vld [vmem:[#allocation2 + $0xf8] sm:$0xff]
    %103 = vmatpush.msra.mxu0 %v86
    %104 = vmatpush.msra.mxu0 %v85
    %105 = vmatpush.msra.mxu0 %v84
    %106 = vmatpush.msra.mxu0 %v83
    %107 = vmatpush.msra.mxu0 %v82
    %108 = vmatpush.msra.mxu0 %v81
    %109 = vmatpush.msra.mxu0 %v80
    %110 = vmatpush.msra.mxu0 %v79
    %111 = vmatpush.msra.mxu0 %v78
    %112 = vmatpush.msra.mxu0 %v77
    %113 = vmatpush.msra.mxu0 %v76
    %114 = vmatpush.msra.mxu0 %v75
    %115 = vmatpush.msra.mxu0 %v74
    %116 = vmatpush.msra.mxu0 %v73
    %117 = vmatpush.msra.mxu0 %v72
    %118 = vmatpush.msra.mxu0 %v71
    %119 = vmatmul.f32.gmra.mxu0 %v69
    %v120 = vpop.f32.mrf.mxu0
    %v121 = vadd.f32 0.0, %v120
    %122 = vdwg.mxu0
    %123 = vmatpush.msra.mxu0 %v102
    %124 = vmatpush.msra.mxu0 %v101
    %125 = vmatpush.msra.mxu0 %v100
    %126 = vmatpush.msra.mxu0 %v99
    %127 = vmatpush.msra.mxu0 %v98
    %128 = vmatpush.msra.mxu0 %v97
    %129 = vmatpush.msra.mxu0 %v96
    %130 = vmatpush.msra.mxu0 %v95
    %131 = vmatpush.msra.mxu0 %v94
    %132 = vmatpush.msra.mxu0 %v93
    %133 = vmatpush.msra.mxu0 %v92
    %134 = vmatpush.msra.mxu0 %v91
    %135 = vmatpush.msra.mxu0 %v90
    %136 = vmatpush.msra.mxu0 %v89
    %137 = vmatpush.msra.mxu0 %v88
    %138 = vmatpush.msra.mxu0 %v87
    %139 = vmatmul.f32.gmra.mxu0 %v70
    %v140 = vpop.f32.mrf.mxu0
    %v141 = vadd.f32 %v121, %v140
    %142 = vdwg.mxu0
    %v143 = vmax.f32 %v141, 0.0
    %v144 = vld [vmem:[#allocation5] sm:$0xff]
    %v145 = vld [vmem:[#allocation5 + $0x8] sm:$0xff]
    %v146 = vld [vmem:[#allocation5 + $0x10] sm:$0xff]
    %v147 = vld [vmem:[#allocation5 + $0x18] sm:$0xff]
    %v148 = vld [vmem:[#allocation5 + $0x20] sm:$0xff]
    %v149 = vld [vmem:[#allocation5 + $0x28] sm:$0xff]
    %v150 = vld [vmem:[#allocation5 + $0x30] sm:$0xff]
    %v151 = vld [vmem:[#allocation5 + $0x38] sm:$0xff]
    %v152 = vld [vmem:[#allocation5 + $0x40] sm:$0xff]
    %v153 = vld [vmem:[#allocation5 + $0x48] sm:$0xff]
    %v154 = vld [vmem:[#allocation5 + $0x50] sm:$0xff]
    %v155 = vld [vmem:[#allocation5 + $0x58] sm:$0xff]
    %v156 = vld [vmem:[#allocation5 + $0x60] sm:$0xff]
    %v157 = vld [vmem:[#allocation5 + $0x68] sm:$0xff]
    %v158 = vld [vmem:[#allocation5 + $0x70] sm:$0xff]
    %v159 = vld [vmem:[#allocation5 + $0x78] sm:$0xff]
    %v160 = vld [vmem:[%s3] sm:$0x1]
    %v162 = vperm.slane %v160, 0
    %164 = vmatpush.msra.mxu0 %v159
    %165 = vmatpush.msra.mxu0 %v158
    %166 = vmatpush.msra.mxu0 %v157
    %167 = vmatpush.msra.mxu0 %v156
    %168 = vmatpush.msra.mxu0 %v155
    %169 = vmatpush.msra.mxu0 %v154
    %170 = vmatpush.msra.mxu0 %v153
    %171 = vmatpush.msra.mxu0 %v152
    %172 = vmatpush.msra.mxu0 %v151
    %173 = vmatpush.msra.mxu0 %v150
    %174 = vmatpush.msra.mxu0 %v149
    %175 = vmatpush.msra.mxu0 %v148
    %176 = vmatpush.msra.mxu0 %v147
    %177 = vmatpush.msra.mxu0 %v146
    %178 = vmatpush.msra.mxu0 %v145
    %179 = vmatpush.msra.mxu0 %v144
    %180 = vmatmul.f32.gmra.mxu0 %v143
    %v181 = vpop.f32.mrf.mxu0
    %v182 = vadd.f32 %v162, %v181
    %183 = vdwg.mxu0
    %184 = vst [vmem:[#allocation7] sm:$0xff] %v182
    // Predicated region
    $region26: #{_forward_padded.1} parent=1 // pred_check
      _
    $region27: #{_forward_padded.1} parent=1 // pred_check_branch
      %186 = sbr.rel (0) target = $region29
    $region28: #{_forward_padded.1} parent=1 // pred_region
      %188 = vsyncadd [#allocation4], 0
      %s190 = sshll.u32 [#allocation7], 4
      %s191 = int_to_ptr.vmem [resolvable:$true] %s190
      %s192 = sshll.u32 %s4, 4
      %s193 = int_to_ptr.hbm [resolvable:$true] %s192
      %195 = dma.vmem_to_hbm [thread:$0]  %s191, 128, %s193, [#allocation4]
    $region29: #{_forward_padded.1} parent=1 // pred_fallthru
      _
    // Predicated region
    $region30: #{_forward_padded.1} parent=1 // pred_check
      _
    $region31: #{_forward_padded.1} parent=1 // pred_check_branch
      %197 = sbr.rel (0) target = $region33
    $region32: #{_forward_padded.1} parent=1 // pred_region
      %199 = dma.done [#allocation4], 128
    $region33: #{_forward_padded.1} parent=1 // pred_fallthru
      _
    %200 = vsyncpa [#allocation3], 1
    %201 = vsyncpa [#allocation6], 1
    %202 = vsyncpa [#allocation4], 1

</llo_original>
